<compile_context>
chip_gen: v5e
topology: v5e:2x2
jax: 0.10.0
libtpu: 0.0.40
codegen_flags: <defaults>
</compile_context>

<pallas_src>
import functools
import math

import jax
import jax.numpy as jnp
import numpy as np
from jax import lax
from jax.experimental import pallas as pl
from jax.experimental.pallas import tpu as pltpu

# ----------------------------- configuration -------------------------------
B = 2            # batch
L = 8            # sequence length
D = 32           # embed_dim
NUM_HEADS = 4
HEAD_DIM = D // NUM_HEADS
FF = 64          # feedforward_dim
EPS = 1e-5       # nn.LayerNorm default eps


# ------------------------------- kernel ------------------------------------
def encoder_block_kernel(p_ref, d_ref, out_ref, *,
                         batch, seq_len, num_heads, head_dim, ff_dim):
    n = batch * seq_len            # 16 rows (B*L)
    d = num_heads * head_dim       # 32 embed dim
    hn = num_heads * n             # 64 score columns (heads x rows)
    ff = ff_dim
    f32 = jnp.float32

    # ---- static slices of the packed parameter/constant slab (128x128) ----
    wq = p_ref[0:d, 0:d]                        # (d,d)  1/sqrt(hd) folded in
    wk = p_ref[0:d, d:2 * d]                    # (d,d)
    wv = p_ref[0:d, 2 * d:3 * d]                # (d,d)
    wo = p_ref[0:d, 3 * d:4 * d]                # (d,d)
    w1 = p_ref[d:2 * d, 0:ff]                   # (d,ff)
    bias = p_ref[d:d + n, ff:ff + hn]           # (n,hn)  0 / -1e30 batch mask
    w2 = p_ref[2 * d:2 * d + ff, 0:d]           # (ff,d)
    hmask = p_ref[2 * d:2 * d + hn, d:2 * d]    # (hn,d)  head-block 0/1 mask
    rep = p_ref[2 * d:2 * d + hn, 2 * d:2 * d + n]  # (hn,n) stacked identities

    # ---- per-call data slab (24x128) ---------------------------------------
    x = d_ref[0:n, 0:d]                         # (n,d)
    bq = d_ref[n:n + 1, 0:d]                    # pre-scaled by 1/sqrt(hd)
    bk = d_ref[n:n + 1, d:2 * d]
    bv = d_ref[n:n + 1, 2 * d:3 * d]
    b1 = d_ref[n + 1:n + 2, 0:ff]
    bo = d_ref[n + 2:n + 3, 0:d]
    g1 = d_ref[n + 3:n + 4, 0:d]
    be1 = d_ref[n + 4:n + 5, 0:d]
    bf2 = d_ref[n + 5:n + 6, 0:d]
    g2 = d_ref[n + 6:n + 7, 0:d]
    be2 = d_ref[n + 7:n + 8, 0:d]

    mm = lambda a, b: jnp.dot(a, b, preferred_element_type=f32)
    ones_over_d = jnp.full((d, d), 1.0 / d, dtype=f32)   # splat constant

    def layernorm(y, gamma, beta):
        # row means on the (idle) MXU instead of XLU lane reductions
        mu = mm(y, ones_over_d)
        var = mm(y * y, ones_over_d) - mu * mu
        return (y - mu) * lax.rsqrt(var + EPS) * gamma + beta

    # ---- multi-head attention (all heads via block-masked 2-D matmuls) -----
    q = mm(x, wq) + bq                          # (n,d), scale already folded in
    xrep = mm(rep, x)                           # (hn,d) 4x row-tiled x (MXU copy)
    k_big = (mm(xrep, wk) + bk) * hmask         # (hn,d) masked replicated K
    v_big = (mm(xrep, wv) + bv) * hmask         # (hn,d) masked replicated V

    # scores[i, h*n+j] = <q_h[i], k_h[j]>   (MXU consumes K transposed natively)
    scores = lax.dot_general(q, k_big, (((1,), (1,)), ((), ())),
                             preferred_element_type=f32) + bias     # (n,hn)
    # Row max over all heads' columns: softmax value unchanged (constant within
    # each head block); denom is clamped below so underflow can't create NaN.
    m = jnp.max(scores, axis=-1, keepdims=True)
    p = jnp.exp(scores - m)                     # masked entries -> 0

    denom = mm(p, hmask)                        # (n,d) per-head sums, head cols
    num = mm(p, v_big)                          # (n,d) unnormalized outputs
    dc = jnp.maximum(denom, 1e-20)
    r = pl.reciprocal(dc, approx=True)          # EUP vrcp
    r = r * (2.0 - dc * r)                      # one Newton step -> f32 accuracy
    attn_out = num * r                          # softmax-normalized

    # ---- output projection, residual + LayerNorm1 --------------------------
    mha = mm(attn_out, wo) + bo
    h1 = layernorm(mha + x, g1, be1)

    # ---- feedforward (Linear -> ReLU -> Linear), residual + LayerNorm2 -----
    f = jnp.maximum(mm(h1, w1) + b1, 0.0)
    f = mm(f, w2) + bf2
    out_ref[...] = layernorm(f + h1, g2, be2)


# ------------------------------- wrapper ------------------------------------
def _host_constants(n, d, hn, head_dim, seq_len):
    """Compile-time constant matrices (built once with NumPy)."""
    rows = np.arange(n)[:, None] // seq_len
    cols = (np.arange(hn)[None, :] % n) // seq_len
    bias = np.where(rows == cols, 0.0, -1e30).astype(np.float32)        # (n,hn)
    hrow = np.arange(hn)[:, None] // n
    hcol = np.arange(d)[None, :] // head_dim
    hmask = (hrow == hcol).astype(np.float32)                           # (hn,d)
    rep = np.tile(np.eye(n, dtype=np.float32), (NUM_HEADS, 1))          # (hn,n)
    return bias, hmask, rep


def encoder_block(x, params):
    """x: (B, L, D) float32. params: dict of weights in (in, out) layout."""
    b, l, d = x.shape
    n = b * l
    hd = d // NUM_HEADS
    hn = NUM_HEADS * n
    ff = params["w_ff1"].shape[1]
    # structural requirements of the packed-slab layout (hold for this config)
    assert d == NUM_HEADS * hd and ff == hn and ff + hn == 4 * d
    assert n <= d and 2 * d + n <= 4 * d

    f32 = jnp.float32
    scale = 1.0 / math.sqrt(hd)
    bias_np, hmask_np, rep_np = _host_constants(n, d, hn, hd, l)

    # --- static parameter + constant slab: (2d+hn, 4d) = (128, 128) ---------
    top = jnp.concatenate([params["wq"] * scale, params["wk"],
                           params["wv"], params["wo"]], axis=1)          # (d,4d)
    bias_block = jnp.concatenate(
        [jnp.asarray(bias_np), jnp.zeros((d - n, hn), f32)], axis=0)     # (d,hn)
    mid = jnp.concatenate([params["w_ff1"], bias_block], axis=1)         # (d,4d)
    bot = jnp.concatenate([params["w_ff2"], jnp.asarray(hmask_np),
                           jnp.asarray(rep_np),
                           jnp.zeros((hn, 2 * d - n), f32)], axis=1)     # (hn,4d)
    pslab = jnp.concatenate([top, mid, bot], axis=0)                     # (128,128)

    # --- per-call data slab: (n+8, 4d) = (24, 128) ---------------------------
    x2 = x.reshape(n, d)
    xrows = jnp.pad(x2, ((0, 0), (0, 3 * d)))
    bqkv = jnp.concatenate([params["bq"] * scale, params["bk"], params["bv"],
                            jnp.zeros((1, d), f32)], axis=1)
    b1row = jnp.pad(params["b_ff1"], ((0, 0), (0, 4 * d - ff)))
    vrows = jnp.pad(jnp.concatenate(
        [params["bo"], params["ln1_g"], params["ln1_b"],
         params["b_ff2"], params["ln2_g"], params["ln2_b"]], axis=0),
        ((0, 0), (0, 3 * d)))
    dslab = jnp.concatenate([xrows, bqkv, b1row, vrows], axis=0)         # (24,128)

    kernel = functools.partial(encoder_block_kernel, batch=b, seq_len=l,
                               num_heads=NUM_HEADS, head_dim=hd, ff_dim=ff)
    vmem = pl.BlockSpec(memory_space=pltpu.MemorySpace.VMEM)
    out = pl.pallas_call(
        kernel,
        out_shape=jax.ShapeDtypeStruct((n, d), f32),
        in_specs=[vmem, vmem],
        out_specs=vmem,
    )(pslab, dslab)
    return out.reshape(b, l, d)


# ----------------------- deterministic parameter init ------------------------
def xavier_uniform(key, fan_in, fan_out):
    bound = np.sqrt(6.0 / (fan_in + fan_out))
    # (in, out) layout so kernel computes x @ W (== x @ W_torch.T)
    return jax.random.uniform(key, (fan_in, fan_out), jnp.float32, -bound, bound)


def make_params(key):
    keys = jax.random.split(key, 6)
    zeros_d = jnp.zeros((1, D), jnp.float32)
    return {
        "wq": xavier_uniform(keys[0], D, D), "bq": zeros_d,
        "wk": xavier_uniform(keys[1], D, D), "bk": zeros_d,
        "wv": xavier_uniform(keys[2], D, D), "bv": zeros_d,
        "wo": xavier_uniform(keys[3], D, D), "bo": zeros_d,
        "ln1_g": jnp.ones((1, D), jnp.float32), "ln1_b": zeros_d,
        "ln2_g": jnp.ones((1, D), jnp.float32), "ln2_b": zeros_d,
        "w_ff1": xavier_uniform(keys[4], D, FF),
        "b_ff1": jnp.zeros((1, FF), jnp.float32),
        "w_ff2": xavier_uniform(keys[5], FF, D),
        "b_ff2": zeros_d,
    }


# ----------------------------- pure-JAX reference ----------------------------
def reference(x, p):
    def ln(y, g, b):
        mu = jnp.mean(y, axis=-1, keepdims=True)
        var = jnp.mean((y - mu) ** 2, axis=-1, keepdims=True)
        return (y - mu) / jnp.sqrt(var + EPS) * g + b

    b, l, d = x.shape
    q = (x @ p["wq"] + p["bq"]).reshape(b, l, NUM_HEADS, HEAD_DIM).transpose(0, 2, 1, 3)
    k = (x @ p["wk"] + p["bk"]).reshape(b, l, NUM_HEADS, HEAD_DIM).transpose(0, 2, 1, 3)
    v = (x @ p["wv"] + p["bv"]).reshape(b, l, NUM_HEADS, HEAD_DIM).transpose(0, 2, 1, 3)
    scores = jnp.einsum("bhqd,bhkd->bhqk", q, k) / jnp.sqrt(jnp.float32(HEAD_DIM))
    attn = jax.nn.softmax(scores, axis=-1)
    o = jnp.einsum("bhqk,bhkd->bhqd", attn, v).transpose(0, 2, 1, 3).reshape(b, l, d)
    o = o @ p["wo"] + p["bo"]
    h1 = ln(o + x, p["ln1_g"], p["ln1_b"])
    ffo = jnp.maximum(h1 @ p["w_ff1"] + p["b_ff1"], 0.0) @ p["w_ff2"] + p["b_ff2"]
    return ln(ffo + h1, p["ln2_g"], p["ln2_b"])


# --------------------------------- main --------------------------------------
if __name__ == "__main__":
    key = jax.random.PRNGKey(0)
    kx, kp = jax.random.split(key)
    x = jax.random.normal(kx, (B, L, D), jnp.float32)
    params = make_params(kp)

    out = encoder_block(x, params)
    out = jax.block_until_ready(out)

    ref = reference(x, params)
    if not np.allclose(np.asarray(out), np.asarray(ref), atol=1e-4, rtol=1e-4):
        raise AssertionError("Pallas kernel output does not match JAX reference")

    print("KERNEL_OK")
</pallas_src>

<mosaic_0001>
module attributes {stable_mosaic.version = 11 : i64} {
  func.func @encoder_block_kernel(%arg0: memref<128x128xf32, #tpu.memory_space<vmem>>, %arg1: memref<24x128xf32, #tpu.memory_space<vmem>>, %arg2: memref<16x32xf32, #tpu.memory_space<vmem>>) attributes {dimension_semantics = [], scalar_prefetch = 0 : i64, scratch_operands = 0 : i64, tpu.core_type = #tpu.core_type<tc>} {
    %c0 = arith.constant 0 : index
    %c0_0 = arith.constant 0 : index
    %0 = vector.load %arg0[%c0, %c0_0] : memref<128x128xf32, #tpu.memory_space<vmem>>, vector<32x32xf32>
    %c0_1 = arith.constant 0 : index
    %c32 = arith.constant 32 : index
    %1 = vector.load %arg0[%c0_1, %c32] : memref<128x128xf32, #tpu.memory_space<vmem>>, vector<32x32xf32>
    %c0_2 = arith.constant 0 : index
    %c64 = arith.constant 64 : index
    %2 = vector.load %arg0[%c0_2, %c64] : memref<128x128xf32, #tpu.memory_space<vmem>>, vector<32x32xf32>
    %c0_3 = arith.constant 0 : index
    %c96 = arith.constant 96 : index
    %3 = vector.load %arg0[%c0_3, %c96] : memref<128x128xf32, #tpu.memory_space<vmem>>, vector<32x32xf32>
    %c32_4 = arith.constant 32 : index
    %c0_5 = arith.constant 0 : index
    %4 = vector.load %arg0[%c32_4, %c0_5] : memref<128x128xf32, #tpu.memory_space<vmem>>, vector<32x64xf32>
    %c32_6 = arith.constant 32 : index
    %c64_7 = arith.constant 64 : index
    %5 = vector.load %arg0[%c32_6, %c64_7] : memref<128x128xf32, #tpu.memory_space<vmem>>, vector<16x64xf32>
    %c64_8 = arith.constant 64 : index
    %c0_9 = arith.constant 0 : index
    %6 = vector.load %arg0[%c64_8, %c0_9] : memref<128x128xf32, #tpu.memory_space<vmem>>, vector<64x32xf32>
    %c64_10 = arith.constant 64 : index
    %c32_11 = arith.constant 32 : index
    %7 = vector.load %arg0[%c64_10, %c32_11] : memref<128x128xf32, #tpu.memory_space<vmem>>, vector<64x32xf32>
    %c64_12 = arith.constant 64 : index
    %c64_13 = arith.constant 64 : index
    %8 = vector.load %arg0[%c64_12, %c64_13] : memref<128x128xf32, #tpu.memory_space<vmem>>, vector<64x16xf32>
    %c0_14 = arith.constant 0 : index
    %c0_15 = arith.constant 0 : index
    %9 = vector.load %arg1[%c0_14, %c0_15] : memref<24x128xf32, #tpu.memory_space<vmem>>, vector<16x32xf32>
    %c16 = arith.constant 16 : index
    %c0_16 = arith.constant 0 : index
    %10 = vector.load %arg1[%c16, %c0_16] : memref<24x128xf32, #tpu.memory_space<vmem>>, vector<1x32xf32>
    %c16_17 = arith.constant 16 : index
    %c32_18 = arith.constant 32 : index
    %11 = vector.load %arg1[%c16_17, %c32_18] : memref<24x128xf32, #tpu.memory_space<vmem>>, vector<1x32xf32>
    %c16_19 = arith.constant 16 : index
    %c64_20 = arith.constant 64 : index
    %12 = vector.load %arg1[%c16_19, %c64_20] : memref<24x128xf32, #tpu.memory_space<vmem>>, vector<1x32xf32>
    %c17 = arith.constant 17 : index
    %c0_21 = arith.constant 0 : index
    %13 = vector.load %arg1[%c17, %c0_21] : memref<24x128xf32, #tpu.memory_space<vmem>>, vector<1x64xf32>
    %c18 = arith.constant 18 : index
    %c0_22 = arith.constant 0 : index
    %14 = vector.load %arg1[%c18, %c0_22] : memref<24x128xf32, #tpu.memory_space<vmem>>, vector<1x32xf32>
    %c19 = arith.constant 19 : index
    %c0_23 = arith.constant 0 : index
    %15 = vector.load %arg1[%c19, %c0_23] : memref<24x128xf32, #tpu.memory_space<vmem>>, vector<1x32xf32>
    %c20 = arith.constant 20 : index
    %c0_24 = arith.constant 0 : index
    %16 = vector.load %arg1[%c20, %c0_24] : memref<24x128xf32, #tpu.memory_space<vmem>>, vector<1x32xf32>
    %c21 = arith.constant 21 : index
    %c0_25 = arith.constant 0 : index
    %17 = vector.load %arg1[%c21, %c0_25] : memref<24x128xf32, #tpu.memory_space<vmem>>, vector<1x32xf32>
    %c22 = arith.constant 22 : index
    %c0_26 = arith.constant 0 : index
    %18 = vector.load %arg1[%c22, %c0_26] : memref<24x128xf32, #tpu.memory_space<vmem>>, vector<1x32xf32>
    %c23 = arith.constant 23 : index
    %c0_27 = arith.constant 0 : index
    %19 = vector.load %arg1[%c23, %c0_27] : memref<24x128xf32, #tpu.memory_space<vmem>>, vector<1x32xf32>
    %cst = arith.constant 3.125000e-02 : f32
    %20 = vector.broadcast %cst : f32 to vector<32x32xf32>
    %cst_28 = arith.constant dense<0.000000e+00> : vector<16x32xf32>
    %21 = tpu.matmul %9, %0, %cst_28 {dimension_numbers = #tpu.dot_dimension_numbers<[1], [0], [0], [1], [0, 0, 1, 1], [], []>} : vector<16x32xf32>, vector<32x32xf32>, vector<16x32xf32> -> vector<16x32xf32>
    %22 = vector.broadcast %10 : vector<1x32xf32> to vector<16x32xf32>
    %23 = arith.addf %21, %22 : vector<16x32xf32>
    %cst_29 = arith.constant dense<0.000000e+00> : vector<64x32xf32>
    %24 = tpu.matmul %8, %9, %cst_29 {dimension_numbers = #tpu.dot_dimension_numbers<[1], [0], [0], [1], [0, 0, 1, 1], [], []>} : vector<64x16xf32>, vector<16x32xf32>, vector<64x32xf32> -> vector<64x32xf32>
    %cst_30 = arith.constant dense<0.000000e+00> : vector<64x32xf32>
    %25 = tpu.matmul %24, %1, %cst_30 {dimension_numbers = #tpu.dot_dimension_numbers<[1], [0], [0], [1], [0, 0, 1, 1], [], []>} : vector<64x32xf32>, vector<32x32xf32>, vector<64x32xf32> -> vector<64x32xf32>
    %26 = vector.broadcast %11 : vector<1x32xf32> to vector<64x32xf32>
    %27 = arith.addf %25, %26 : vector<64x32xf32>
    %28 = arith.mulf %27, %7 : vector<64x32xf32>
    %cst_31 = arith.constant dense<0.000000e+00> : vector<64x32xf32>
    %29 = tpu.matmul %24, %2, %cst_31 {dimension_numbers = #tpu.dot_dimension_numbers<[1], [0], [0], [1], [0, 0, 1, 1], [], []>} : vector<64x32xf32>, vector<32x32xf32>, vector<64x32xf32> -> vector<64x32xf32>
    %30 = vector.broadcast %12 : vector<1x32xf32> to vector<64x32xf32>
    %31 = arith.addf %29, %30 : vector<64x32xf32>
    %32 = arith.mulf %31, %7 : vector<64x32xf32>
    %cst_32 = arith.constant dense<0.000000e+00> : vector<16x64xf32>
    %33 = tpu.matmul %23, %28, %cst_32 {dimension_numbers = #tpu.dot_dimension_numbers<[1], [1], [0], [0], [0, 0, 1, 0], [], []>} : vector<16x32xf32>, vector<64x32xf32>, vector<16x64xf32> -> vector<16x64xf32>
    %34 = arith.addf %33, %5 : vector<16x64xf32>
    %cst_33 = arith.constant dense<0xFF800000> : vector<16xf32>
    %35 = vector.multi_reduction <maximumf>, %34, %cst_33 [1] : vector<16x64xf32> to vector<16xf32>
    %36 = vector.shape_cast %35 : vector<16xf32> to vector<16x1xf32>
    %37 = vector.broadcast %36 : vector<16x1xf32> to vector<16x64xf32>
    %38 = arith.subf %34, %37 : vector<16x64xf32>
    %39 = math.exp %38 : vector<16x64xf32>
    %cst_34 = arith.constant dense<0.000000e+00> : vector<16x32xf32>
    %40 = tpu.matmul %39, %7, %cst_34 {dimension_numbers = #tpu.dot_dimension_numbers<[1], [0], [0], [1], [0, 0, 1, 1], [], []>} : vector<16x64xf32>, vector<64x32xf32>, vector<16x32xf32> -> vector<16x32xf32>
    %cst_35 = arith.constant dense<0.000000e+00> : vector<16x32xf32>
    %41 = tpu.matmul %39, %32, %cst_35 {dimension_numbers = #tpu.dot_dimension_numbers<[1], [0], [0], [1], [0, 0, 1, 1], [], []>} : vector<16x64xf32>, vector<64x32xf32>, vector<16x32xf32> -> vector<16x32xf32>
    %cst_36 = arith.constant 9.99999968E-21 : f32
    %42 = vector.broadcast %cst_36 : f32 to vector<16x32xf32>
    %43 = arith.maximumf %40, %42 : vector<16x32xf32>
    %44 = tpu.reciprocal %43 {approx = true} : vector<16x32xf32> -> vector<16x32xf32>
    %45 = arith.mulf %43, %44 : vector<16x32xf32>
    %cst_37 = arith.constant 2.000000e+00 : f32
    %46 = vector.broadcast %cst_37 : f32 to vector<16x32xf32>
    %47 = arith.subf %46, %45 : vector<16x32xf32>
    %48 = arith.mulf %44, %47 : vector<16x32xf32>
    %49 = arith.mulf %41, %48 : vector<16x32xf32>
    %cst_38 = arith.constant dense<0.000000e+00> : vector<16x32xf32>
    %50 = tpu.matmul %49, %3, %cst_38 {dimension_numbers = #tpu.dot_dimension_numbers<[1], [0], [0], [1], [0, 0, 1, 1], [], []>} : vector<16x32xf32>, vector<32x32xf32>, vector<16x32xf32> -> vector<16x32xf32>
    %51 = vector.broadcast %14 : vector<1x32xf32> to vector<16x32xf32>
    %52 = arith.addf %50, %51 : vector<16x32xf32>
    %53 = arith.addf %52, %9 : vector<16x32xf32>
    %cst_39 = arith.constant dense<0.000000e+00> : vector<16x32xf32>
    %54 = tpu.matmul %53, %20, %cst_39 {dimension_numbers = #tpu.dot_dimension_numbers<[1], [0], [0], [1], [0, 0, 1, 1], [], []>} : vector<16x32xf32>, vector<32x32xf32>, vector<16x32xf32> -> vector<16x32xf32>
    %55 = arith.mulf %53, %53 : vector<16x32xf32>
    %cst_40 = arith.constant dense<0.000000e+00> : vector<16x32xf32>
    %56 = tpu.matmul %55, %20, %cst_40 {dimension_numbers = #tpu.dot_dimension_numbers<[1], [0], [0], [1], [0, 0, 1, 1], [], []>} : vector<16x32xf32>, vector<32x32xf32>, vector<16x32xf32> -> vector<16x32xf32>
    %57 = arith.mulf %54, %54 : vector<16x32xf32>
    %58 = arith.subf %56, %57 : vector<16x32xf32>
    %59 = arith.subf %53, %54 : vector<16x32xf32>
    %cst_41 = arith.constant 9.99999974E-6 : f32
    %60 = vector.broadcast %cst_41 : f32 to vector<16x32xf32>
    %61 = arith.addf %58, %60 : vector<16x32xf32>
    %62 = math.rsqrt %61 : vector<16x32xf32>
    %63 = arith.mulf %59, %62 : vector<16x32xf32>
    %64 = vector.broadcast %15 : vector<1x32xf32> to vector<16x32xf32>
    %65 = arith.mulf %63, %64 : vector<16x32xf32>
    %66 = vector.broadcast %16 : vector<1x32xf32> to vector<16x32xf32>
    %67 = arith.addf %65, %66 : vector<16x32xf32>
    %cst_42 = arith.constant dense<0.000000e+00> : vector<16x64xf32>
    %68 = tpu.matmul %67, %4, %cst_42 {dimension_numbers = #tpu.dot_dimension_numbers<[1], [0], [0], [1], [0, 0, 1, 1], [], []>} : vector<16x32xf32>, vector<32x64xf32>, vector<16x64xf32> -> vector<16x64xf32>
    %69 = vector.broadcast %13 : vector<1x64xf32> to vector<16x64xf32>
    %70 = arith.addf %68, %69 : vector<16x64xf32>
    %cst_43 = arith.constant 0.000000e+00 : f32
    %71 = vector.broadcast %cst_43 : f32 to vector<16x64xf32>
    %72 = arith.maximumf %70, %71 : vector<16x64xf32>
    %cst_44 = arith.constant dense<0.000000e+00> : vector<16x32xf32>
    %73 = tpu.matmul %72, %6, %cst_44 {dimension_numbers = #tpu.dot_dimension_numbers<[1], [0], [0], [1], [0, 0, 1, 1], [], []>} : vector<16x64xf32>, vector<64x32xf32>, vector<16x32xf32> -> vector<16x32xf32>
    %74 = vector.broadcast %17 : vector<1x32xf32> to vector<16x32xf32>
    %75 = arith.addf %73, %74 : vector<16x32xf32>
    %76 = arith.addf %75, %67 : vector<16x32xf32>
    %cst_45 = arith.constant dense<0.000000e+00> : vector<16x32xf32>
    %77 = tpu.matmul %76, %20, %cst_45 {dimension_numbers = #tpu.dot_dimension_numbers<[1], [0], [0], [1], [0, 0, 1, 1], [], []>} : vector<16x32xf32>, vector<32x32xf32>, vector<16x32xf32> -> vector<16x32xf32>
    %78 = arith.mulf %76, %76 : vector<16x32xf32>
    %cst_46 = arith.constant dense<0.000000e+00> : vector<16x32xf32>
    %79 = tpu.matmul %78, %20, %cst_46 {dimension_numbers = #tpu.dot_dimension_numbers<[1], [0], [0], [1], [0, 0, 1, 1], [], []>} : vector<16x32xf32>, vector<32x32xf32>, vector<16x32xf32> -> vector<16x32xf32>
    %80 = arith.mulf %77, %77 : vector<16x32xf32>
    %81 = arith.subf %79, %80 : vector<16x32xf32>
    %82 = arith.subf %76, %77 : vector<16x32xf32>
    %cst_47 = arith.constant 9.99999974E-6 : f32
    %83 = vector.broadcast %cst_47 : f32 to vector<16x32xf32>
    %84 = arith.addf %81, %83 : vector<16x32xf32>
    %85 = math.rsqrt %84 : vector<16x32xf32>
    %86 = arith.mulf %82, %85 : vector<16x32xf32>
    %87 = vector.broadcast %18 : vector<1x32xf32> to vector<16x32xf32>
    %88 = arith.mulf %86, %87 : vector<16x32xf32>
    %89 = vector.broadcast %19 : vector<1x32xf32> to vector<16x32xf32>
    %90 = arith.addf %88, %89 : vector<16x32xf32>
    %c0_48 = arith.constant 0 : index
    %c0_49 = arith.constant 0 : index
    %91 = vector.load %arg2[%c0_48, %c0_49] : memref<16x32xf32, #tpu.memory_space<vmem>>, vector<16x32xf32>
    tpu.vector_store %arg2[%c0_48, %c0_49], %90 {strides = array<i32>} : memref<16x32xf32, #tpu.memory_space<vmem>>, vector<16x32xf32>,
    return
  }
}

</mosaic_0001>

<llo_original>
// kernel: tpu_custom_call.1
$region0: #{tpu_custom_call.1}
  #allocation0 [shape = 'u32[]', space=smem, size = 0x4, offset = 0x4, fixed_abs, tag = 'smem constant byte address 0x4 - core index']
  #allocation1 [shape = 'u32[72,128]{1,0:T(1,128)}', space=vmem, size = 0x9000, scoped, tag = 'internal scratch']
  %s0 = inlined_call_operand.hbm [shape: f32[128,128], index: 0, kind: input, shape index: {}]
  %s1 = inlined_call_operand.hbm [shape: f32[24,128], index: 1, kind: input, shape index: {}]
  %s2 = inlined_call_operand.hbm [shape: f32[16,32], index: 2, kind: output, shape index: {}]
  %s3 = sld [smem:[#allocation0]]
  $region26: #{tpu_custom_call.1} parent=0
    _
  %s5 = ssub.s32 1, %s3
  %s6 = scalar_select 0, %s5, %s3
  $region1: #{tpu_custom_call.1} parent=0
    #allocation2 [shape = 'u8[65536]{0}', space=vmem, size = 0x10000, scoped, tag = 'input window, operand 0, single buffered']
    #allocation3 [shape = 's32[1]{0}', space=sflag, size = 0x4, scoped, tag = 'scoped memory for tpu_custom_call.1']
    #allocation4 [shape = 's32[1]{0}', space=sflag, size = 0x4, scoped, tag = 'scoped memory for tpu_custom_call.1']
    #allocation5 [shape = 'u8[12288]{0}', space=vmem, size = 0x3000, scoped, tag = 'input window, operand 1, single buffered']
    #allocation6 [shape = 's32[1]{0}', space=sflag, size = 0x4, scoped, tag = 'scoped memory for tpu_custom_call.1']
    #allocation7 [shape = 'u8[8192]{0}', space=vmem, size = 0x2000, scoped, tag = 'output window, operand 0, single buffered']
    %7 = vsyncpa [#allocation3], 0
    %8 = vsyncpa [#allocation6], 0
    %9 = vsyncpa [#allocation4], 0
    // Predicated region
    $region2: #{tpu_custom_call.1} parent=1 // pred_check
      _
    $region3: #{tpu_custom_call.1} parent=1 // pred_check_branch
      %11 = sbr.rel (0) target = $region5
    $region4: #{tpu_custom_call.1} parent=1 // pred_region
      %13 = vsyncadd [#allocation3], 0
      %s14 = sshll.u32 %s0, 4
      %s15 = int_to_ptr.hbm [resolvable:$true] %s14
      %s16 = sshll.u32 [#allocation2], 4
      %s17 = int_to_ptr.vmem [resolvable:$true] %s16
      %22 = dma.hbm_to_vmem [thread:$0]  %s15, 2048, %s17, [#allocation3], 128, 128, 8
    $region5: #{tpu_custom_call.1} parent=1 // pred_fallthru
      _
    // Predicated region
    $region6: #{tpu_custom_call.1} parent=1 // pred_check
      _
    $region7: #{tpu_custom_call.1} parent=1 // pred_check_branch
      %24 = sbr.rel (0) target = $region9
    $region8: #{tpu_custom_call.1} parent=1 // pred_region
      %26 = vsyncadd [#allocation6], 0
      %s27 = sshll.u32 %s1, 4
      %s28 = int_to_ptr.hbm [resolvable:$true] %s27
      %s29 = sshll.u32 [#allocation5], 4
      %s30 = int_to_ptr.vmem [resolvable:$true] %s29
      %35 = dma.hbm_to_vmem [thread:$0]  %s28, 384, %s30, [#allocation6], 128, 128, 8
    $region9: #{tpu_custom_call.1} parent=1 // pred_fallthru
      _
    // Predicated region
    $region10: #{tpu_custom_call.1} parent=1 // pred_check
      _
    $region11: #{tpu_custom_call.1} parent=1 // pred_check_branch
      %37 = sbr.rel (0) target = $region13
    $region12: #{tpu_custom_call.1} parent=1 // pred_region
      %39 = dma.done [#allocation3], 2048
    $region13: #{tpu_custom_call.1} parent=1 // pred_fallthru
      _
    // Predicated region
    $region14: #{tpu_custom_call.1} parent=1 // pred_check
      _
    $region15: #{tpu_custom_call.1} parent=1 // pred_check_branch
      %41 = sbr.rel (0) target = $region17
    $region16: #{tpu_custom_call.1} parent=1 // pred_region
      %43 = dma.done [#allocation6], 384
    $region17: #{tpu_custom_call.1} parent=1 // pred_fallthru
      _
    %v44 = vld [vmem:[#allocation2] sm:$0xff]
    %v45 = vld [vmem:[#allocation2 + $0x8] sm:$0xff]
    %v46 = vld [vmem:[#allocation2 + $0x10] sm:$0xff]
    %v47 = vld [vmem:[#allocation2 + $0x18] sm:$0xff]
    %v48 = vld [vmem:[#allocation2 + $0x20] sm:$0xff]
    %v49 = vld [vmem:[#allocation2 + $0x28] sm:$0xff]
    %v50 = vld [vmem:[#allocation2 + $0x30] sm:$0xff]
    %v51 = vld [vmem:[#allocation2 + $0x38] sm:$0xff]
    %v52 = vld [vmem:[#allocation2 + $0x40] sm:$0xff]
    %v53 = vld [vmem:[#allocation2 + $0x48] sm:$0xff]
    %v54 = vld [vmem:[#allocation2 + $0x50] sm:$0xff]
    %v55 = vld [vmem:[#allocation2 + $0x58] sm:$0xff]
    %v56 = vld [vmem:[#allocation2 + $0x60] sm:$0xff]
    %v57 = vld [vmem:[#allocation2 + $0x68] sm:$0xff]
    %v58 = vld [vmem:[#allocation2 + $0x70] sm:$0xff]
    %v59 = vld [vmem:[#allocation2 + $0x78] sm:$0xff]
    %v60 = vld [vmem:[#allocation5] sm:$0xff]
    %v61 = vld [vmem:[#allocation5 + $0x8] sm:$0xff]
    %v62 = vld [vmem:[#allocation5 + $0x10] sm:$0x1]
    %v63 = vld [vmem:[#allocation5 + $0x11] sm:$0x1]
    %v64 = vld [vmem:[#allocation5 + $0x12] sm:$0x1]
    %v65 = vld [vmem:[#allocation5 + $0x13] sm:$0x1]
    %v66 = vld [vmem:[#allocation5 + $0x14] sm:$0x1]
    %v67 = vld [vmem:[#allocation5 + $0x15] sm:$0x1]
    %v68 = vld [vmem:[#allocation5 + $0x16] sm:$0x1]
    %v69 = vld [vmem:[#allocation5 + $0x17] sm:$0x1]
    %v70 = vperm.slane %v62, 0
    %vm71 = vcmask 261120
    %v73 = vsel %vm71, %v60, 0
    %v76 = vsel %vm71, %v61, 0
    %78 = vmatpush.msra.mxu0 0.0
    %79 = vmatpush.msra.mxu0 0.0
    %80 = vmatpush.msra.mxu0 0.0
    %81 = vmatpush.msra.mxu0 0.0
    %82 = vmatpush.msra.mxu0 0.0
    %83 = vmatpush.msra.mxu0 0.0
    %84 = vmatpush.msra.mxu0 0.0
    %85 = vmatpush.msra.mxu0 0.0
    %86 = vmatpush.msra.mxu0 0.0
    %87 = vmatpush.msra.mxu0 0.0
    %88 = vmatpush.msra.mxu0 0.0
    %89 = vmatpush.msra.mxu0 0.0
    %90 = vmatpush.msra.mxu0 %v47
    %91 = vmatpush.msra.mxu0 %v46
    %92 = vmatpush.msra.mxu0 %v45
    %93 = vmatpush.msra.mxu0 %v44
    %94 = vmatmul.f32.gmra.mxu0 %v73
    %v95 = vpop.f32.mrf.mxu0
    %v96 = vadd.f32 %v70, %v95
    %97 = vmatmul.f32.gmra.mxu0 %v76
    %v98 = vpop.f32.mrf.mxu0
    %v99 = vadd.f32 %v70, %v98
    %100 = vdwg.mxu0
    %109 = vrot.lane.b32.xlu0 %v52, 64
    %v110 = vpop.permute.xlu0 %109
    %111 = vrot.lane.b32.xlu0 %v53, 64
    %v112 = vpop.permute.xlu0 %111
    %113 = vrot.lane.b32.xlu0 %v54, 64
    %v114 = vpop.permute.xlu0 %113
    %115 = vrot.lane.b32.xlu0 %v55, 64
    %v116 = vpop.permute.xlu0 %115
    %117 = vrot.lane.b32.xlu0 %v56, 64
    %v118 = vpop.permute.xlu0 %117
    %119 = vrot.lane.b32.xlu0 %v57, 64
    %v120 = vpop.permute.xlu0 %119
    %121 = vrot.lane.b32.xlu0 %v58, 64
    %v122 = vpop.permute.xlu0 %121
    %123 = vrot.lane.b32.xlu0 %v59, 64
    %v124 = vpop.permute.xlu0 %123
    %vm125 = vcmask 130048
    %v126 = vsel %vm125, %v110, 0
    %v128 = vsel %vm125, %v112, 0
    %v130 = vsel %vm125, %v114, 0
    %v132 = vsel %vm125, %v116, 0
    %v134 = vsel %vm125, %v118, 0
    %v136 = vsel %vm125, %v120, 0
    %v138 = vsel %vm125, %v122, 0
    %v140 = vsel %vm125, %v124, 0
    %142 = vmatpush.msra.mxu0 0.0
    %143 = vmatpush.msra.mxu0 0.0
    %144 = vmatpush.msra.mxu0 0.0
    %145 = vmatpush.msra.mxu0 0.0
    %146 = vmatpush.msra.mxu0 0.0
    %147 = vmatpush.msra.mxu0 0.0
    %148 = vmatpush.msra.mxu0 0.0
    %149 = vmatpush.msra.mxu0 0.0
    %150 = vmatpush.msra.mxu0 0.0
    %151 = vmatpush.msra.mxu0 0.0
    %152 = vmatpush.msra.mxu0 0.0
    %153 = vmatpush.msra.mxu0 0.0
    %154 = vmatpush.msra.mxu0 0.0
    %155 = vmatpush.msra.mxu0 0.0
    %156 = vmatpush.msra.mxu0 %v61
    %157 = vmatpush.msra.mxu0 %v60
    %158 = vmatmul.f32.gmra.mxu0 %v126
    %v159 = vpop.f32.mrf.mxu0
    %v160 = vadd.f32 0.0, %v159
    %161 = vmatmul.f32.gmra.mxu0 %v128
    %v162 = vpop.f32.mrf.mxu0
    %v163 = vadd.f32 0.0, %v162
    %164 = vmatmul.f32.gmra.mxu0 %v130
    %v165 = vpop.f32.mrf.mxu0
    %v166 = vadd.f32 0.0, %v165
    %167 = vmatmul.f32.gmra.mxu0 %v132
    %v168 = vpop.f32.mrf.mxu0
    %v169 = vadd.f32 0.0, %v168
    %170 = vmatmul.f32.gmra.mxu0 %v134
    %v171 = vpop.f32.mrf.mxu0
    %v172 = vadd.f32 0.0, %v171
    %173 = vmatmul.f32.gmra.mxu0 %v136
    %v174 = vpop.f32.mrf.mxu0
    %v175 = vadd.f32 0.0, %v174
    %176 = vmatmul.f32.gmra.mxu0 %v138
    %v177 = vpop.f32.mrf.mxu0
    %v178 = vadd.f32 0.0, %v177
    %179 = vmatmul.f32.gmra.mxu0 %v140
    %v180 = vpop.f32.mrf.mxu0
    %v181 = vadd.f32 0.0, %v180
    %182 = vdwg.mxu0
    %187 = vrot.lane.b32.xlu0 %v44, 96
    %v188 = vpop.permute.xlu0 %187
    %189 = vrot.lane.b32.xlu0 %v45, 96
    %v190 = vpop.permute.xlu0 %189
    %191 = vrot.lane.b32.xlu0 %v46, 96
    %v192 = vpop.permute.xlu0 %191
    %193 = vrot.lane.b32.xlu0 %v47, 96
    %v194 = vpop.permute.xlu0 %193
    %200 = vrot.lane.b32.xlu0 %v70, 96
    %v201 = vpop.permute.xlu0 %200
    %v204 = vsel %vm71, %v160, 0
    %v207 = vsel %vm71, %v163, 0
    %v210 = vsel %vm71, %v166, 0
    %v213 = vsel %vm71, %v169, 0
    %v216 = vsel %vm71, %v172, 0
    %v219 = vsel %vm71, %v175, 0
    %v222 = vsel %vm71, %v178, 0
    %v225 = vsel %vm71, %v181, 0
    %227 = vmatpush.msra.mxu0 0.0
    %228 = vmatpush.msra.mxu0 0.0
    %229 = vmatpush.msra.mxu0 0.0
    %230 = vmatpush.msra.mxu0 0.0
    %231 = vmatpush.msra.mxu0 0.0
    %232 = vmatpush.msra.mxu0 0.0
    %233 = vmatpush.msra.mxu0 0.0
    %234 = vmatpush.msra.mxu0 0.0
    %235 = vmatpush.msra.mxu0 0.0
    %236 = vmatpush.msra.mxu0 0.0
    %237 = vmatpush.msra.mxu0 0.0
    %238 = vmatpush.msra.mxu0 0.0
    %239 = vmatpush.msra.mxu0 %v194
    %240 = vmatpush.msra.mxu0 %v192
    %241 = vmatpush.msra.mxu0 %v190
    %242 = vmatpush.msra.mxu0 %v188
    %243 = vmatmul.f32.gmra.mxu0 %v204
    %v244 = vpop.f32.mrf.mxu0
    %v245 = vadd.f32 %v201, %v244
    %246 = vmatmul.f32.gmra.mxu0 %v207
    %v247 = vpop.f32.mrf.mxu0
    %v248 = vadd.f32 %v201, %v247
    %249 = vmatmul.f32.gmra.mxu0 %v210
    %v250 = vpop.f32.mrf.mxu0
    %v251 = vadd.f32 %v201, %v250
    %252 = vmatmul.f32.gmra.mxu0 %v213
    %v253 = vpop.f32.mrf.mxu0
    %v254 = vadd.f32 %v201, %v253
    %255 = vmatmul.f32.gmra.mxu0 %v216
    %v256 = vpop.f32.mrf.mxu0
    %v257 = vadd.f32 %v201, %v256
    %258 = vmatmul.f32.gmra.mxu0 %v219
    %v259 = vpop.f32.mrf.mxu0
    %v260 = vadd.f32 %v201, %v259
    %261 = vmatmul.f32.gmra.mxu0 %v222
    %v262 = vpop.f32.mrf.mxu0
    %v263 = vadd.f32 %v201, %v262
    %264 = vmatmul.f32.gmra.mxu0 %v225
    %v265 = vpop.f32.mrf.mxu0
    %v266 = vadd.f32 %v201, %v265
    %267 = vdwg.mxu0
    %268 = vrot.lane.b32.xlu0 %v52, 96
    %v269 = vpop.permute.xlu0 %268
    %270 = vrot.lane.b32.xlu0 %v53, 96
    %v271 = vpop.permute.xlu0 %270
    %272 = vrot.lane.b32.xlu0 %v54, 96
    %v273 = vpop.permute.xlu0 %272
    %274 = vrot.lane.b32.xlu0 %v55, 96
    %v275 = vpop.permute.xlu0 %274
    %276 = vrot.lane.b32.xlu0 %v56, 96
    %v277 = vpop.permute.xlu0 %276
    %278 = vrot.lane.b32.xlu0 %v57, 96
    %v279 = vpop.permute.xlu0 %278
    %280 = vrot.lane.b32.xlu0 %v58, 96
    %v281 = vpop.permute.xlu0 %280
    %282 = vrot.lane.b32.xlu0 %v59, 96
    %v283 = vpop.permute.xlu0 %282
    %v292 = vmul.f32 %v245, %v269
    %v293 = vmul.f32 %v248, %v271
    %v294 = vmul.f32 %v251, %v273
    %v295 = vmul.f32 %v254, %v275
    %v296 = vmul.f32 %v257, %v277
    %v297 = vmul.f32 %v260, %v279
    %v298 = vmul.f32 %v263, %v281
    %v299 = vmul.f32 %v266, %v283
    %300 = vrot.lane.b32.xlu0 %v44, 64
    %v301 = vpop.permute.xlu0 %300
    %302 = vrot.lane.b32.xlu0 %v45, 64
    %v303 = vpop.permute.xlu0 %302
    %304 = vrot.lane.b32.xlu0 %v46, 64
    %v305 = vpop.permute.xlu0 %304
    %306 = vrot.lane.b32.xlu0 %v47, 64
    %v307 = vpop.permute.xlu0 %306
    %312 = vrot.lane.b32.xlu0 %v70, 64
    %v313 = vpop.permute.xlu0 %312
    %315 = vmatpush.msra.mxu0 0.0
    %316 = vmatpush.msra.mxu0 0.0
    %317 = vmatpush.msra.mxu0 0.0
    %318 = vmatpush.msra.mxu0 0.0
    %319 = vmatpush.msra.mxu0 0.0
    %320 = vmatpush.msra.mxu0 0.0
    %321 = vmatpush.msra.mxu0 0.0
    %322 = vmatpush.msra.mxu0 0.0
    %323 = vmatpush.msra.mxu0 0.0
    %324 = vmatpush.msra.mxu0 0.0
    %325 = vmatpush.msra.mxu0 0.0
    %326 = vmatpush.msra.mxu0 0.0
    %327 = vmatpush.msra.mxu0 %v307
    %328 = vmatpush.msra.mxu0 %v305
    %329 = vmatpush.msra.mxu0 %v303
    %330 = vmatpush.msra.mxu0 %v301
    %331 = vmatmul.f32.gmra.mxu0 %v204
    %v332 = vpop.f32.mrf.mxu0
    %v333 = vadd.f32 %v313, %v332
    %334 = vmatmul.f32.gmra.mxu0 %v207
    %v335 = vpop.f32.mrf.mxu0
    %v336 = vadd.f32 %v313, %v335
    %337 = vmatmul.f32.gmra.mxu0 %v210
    %v338 = vpop.f32.mrf.mxu0
    %v339 = vadd.f32 %v313, %v338
    %340 = vmatmul.f32.gmra.mxu0 %v213
    %v341 = vpop.f32.mrf.mxu0
    %v342 = vadd.f32 %v313, %v341
    %343 = vmatmul.f32.gmra.mxu0 %v216
    %v344 = vpop.f32.mrf.mxu0
    %v345 = vadd.f32 %v313, %v344
    %346 = vmatmul.f32.gmra.mxu0 %v219
    %v347 = vpop.f32.mrf.mxu0
    %v348 = vadd.f32 %v313, %v347
    %349 = vmatmul.f32.gmra.mxu0 %v222
    %v350 = vpop.f32.mrf.mxu0
    %v351 = vadd.f32 %v313, %v350
    %352 = vmatmul.f32.gmra.mxu0 %v225
    %v353 = vpop.f32.mrf.mxu0
    %v354 = vadd.f32 %v313, %v353
    %355 = vdwg.mxu0
    %v356 = vmul.f32 %v333, %v269
    %v357 = vmul.f32 %v336, %v271
    %v358 = vmul.f32 %v339, %v273
    %v359 = vmul.f32 %v342, %v275
    %v360 = vmul.f32 %v345, %v277
    %v361 = vmul.f32 %v348, %v279
    %v362 = vmul.f32 %v351, %v281
    %v363 = vmul.f32 %v354, %v283
    %366 = vrot.lane.b32.xlu0 %v48, 64
    %v367 = vpop.permute.xlu0 %366
    %368 = vrot.lane.b32.xlu0 %v49, 64
    %v369 = vpop.permute.xlu0 %368
    %v373 = vsel %vm71, %v96, 0
    %v376 = vsel %vm71, %v99, 0
    %v379 = vsel %vm71, %v292, 0
    %v382 = vsel %vm71, %v293, 0
    %v385 = vsel %vm71, %v294, 0
    %v388 = vsel %vm71, %v295, 0
    %v391 = vsel %vm71, %v296, 0
    %v394 = vsel %vm71, %v297, 0
    %v397 = vsel %vm71, %v298, 0
    %v400 = vsel %vm71, %v299, 0
    %402 = vmatpush.xpose.msra.mxu0 0.0
    %403 = vmatpush.xpose.msra.mxu0 0.0
    %404 = vmatpush.xpose.msra.mxu0 0.0
    %405 = vmatpush.xpose.msra.mxu0 0.0
    %406 = vmatpush.xpose.msra.mxu0 0.0
    %407 = vmatpush.xpose.msra.mxu0 0.0
    %408 = vmatpush.xpose.msra.mxu0 0.0
    %409 = vmatpush.xpose.msra.mxu0 0.0
    %410 = vmatpush.xpose.msra.mxu0 %v400
    %411 = vmatpush.xpose.msra.mxu0 %v397
    %412 = vmatpush.xpose.msra.mxu0 %v394
    %413 = vmatpush.xpose.msra.mxu0 %v391
    %414 = vmatpush.xpose.msra.mxu0 %v388
    %415 = vmatpush.xpose.msra.mxu0 %v385
    %416 = vmatpush.xpose.msra.mxu0 %v382
    %417 = vmatpush.xpose.msra.mxu0 %v379
    %418 = vmatmul.f32.gmra.mxu0 %v373
    %v419 = vpop.f32.mrf.mxu0
    %v420 = vadd.f32 %v367, %v419
    %421 = vmatmul.f32.gmra.mxu0 %v376
    %v422 = vpop.f32.mrf.mxu0
    %v423 = vadd.f32 %v369, %v422
    %424 = vdwg.mxu0
    %vm425 = vcmask 523264
    %v426 = vsel %vm425, %v420, -inf
    %427 = vmax.xlane.f32.xlu0 %v426
    %v428 = vpop.xlane.xlu0 %427
    %v429 = vsel %vm425, %v423, -inf
    %430 = vmax.xlane.f32.xlu0 %v429
    %v431 = vpop.xlane.xlu0 %430
    %v432 = vsub.f32 %v420, %v428
    %v433 = vsub.f32 %v423, %v431
    %v434 = vmul.f32 %v432, 1.442695
    %v435 = vpow.pop %v434
    %v436 = vmul.f32 %v433, 1.442695
    %v437 = vpow.pop %v436
    %v439 = vsel %vm425, %v435, 0
    %v442 = vsel %vm425, %v437, 0
    %444 = vmatpush.msra.mxu0 0.0
    %445 = vmatpush.msra.mxu0 0.0
    %446 = vmatpush.msra.mxu0 0.0
    %447 = vmatpush.msra.mxu0 0.0
    %448 = vmatpush.msra.mxu0 0.0
    %449 = vmatpush.msra.mxu0 0.0
    %450 = vmatpush.msra.mxu0 0.0
    %451 = vmatpush.msra.mxu0 0.0
    %452 = vmatpush.msra.mxu0 %v283
    %453 = vmatpush.msra.mxu0 %v281
    %454 = vmatpush.msra.mxu0 %v279
    %455 = vmatpush.msra.mxu0 %v277
    %456 = vmatpush.msra.mxu0 %v275
    %457 = vmatpush.msra.mxu0 %v273
    %458 = vmatpush.msra.mxu0 %v271
    %459 = vmatpush.msra.mxu0 %v269
    %460 = vmatmul.f32.gmra.mxu0 %v439
    %v461 = vpop.f32.mrf.mxu0
    %v462 = vadd.f32 0.0, %v461
    %463 = vmatmul.f32.gmra.mxu0 %v442
    %v464 = vpop.f32.mrf.mxu0
    %v465 = vadd.f32 0.0, %v464
    %466 = vdwg.mxu0
    %467 = vmatpush.msra.mxu0 0.0
    %468 = vmatpush.msra.mxu0 0.0
    %469 = vmatpush.msra.mxu0 0.0
    %470 = vmatpush.msra.mxu0 0.0
    %471 = vmatpush.msra.mxu0 0.0
    %472 = vmatpush.msra.mxu0 0.0
    %473 = vmatpush.msra.mxu0 0.0
    %474 = vmatpush.msra.mxu0 0.0
    %475 = vmatpush.msra.mxu0 %v363
    %476 = vmatpush.msra.mxu0 %v362
    %477 = vmatpush.msra.mxu0 %v361
    %478 = vmatpush.msra.mxu0 %v360
    %479 = vmatpush.msra.mxu0 %v359
    %480 = vmatpush.msra.mxu0 %v358
    %481 = vmatpush.msra.mxu0 %v357
    %482 = vmatpush.msra.mxu0 %v356
    %483 = vmatmul.f32.gmra.mxu0 %v439
    %v484 = vpop.f32.mrf.mxu0
    %v485 = vadd.f32 0.0, %v484
    %486 = vmatmul.f32.gmra.mxu0 %v442
    %v487 = vpop.f32.mrf.mxu0
    %v488 = vadd.f32 0.0, %v487
    %489 = vdwg.mxu0
    %v490 = vmax.f32 %v462, 1e-20
    %v491 = vmax.f32 %v465, 1e-20
    %v492 = vrcp.pop %v490
    %v493 = vrcp.pop %v491
    %v494 = vmul.f32 %v490, %v492
    %v495 = vmul.f32 %v491, %v493
    %v496 = vsub.f32 2.0, %v494
    %v497 = vsub.f32 2.0, %v495
    %v498 = vmul.f32 %v492, %v496
    %v499 = vmul.f32 %v493, %v497
    %v500 = vmul.f32 %v485, %v498
    %v501 = vmul.f32 %v488, %v499
    %v502 = vperm.slane %v64, 0
    %503 = vrot.lane.b32.xlu0 %v44, 32
    %v504 = vpop.permute.xlu0 %503
    %505 = vrot.lane.b32.xlu0 %v45, 32
    %v506 = vpop.permute.xlu0 %505
    %507 = vrot.lane.b32.xlu0 %v46, 32
    %v508 = vpop.permute.xlu0 %507
    %509 = vrot.lane.b32.xlu0 %v47, 32
    %v510 = vpop.permute.xlu0 %509
    %v516 = vsel %vm71, %v500, 0
    %v519 = vsel %vm71, %v501, 0
    %521 = vmatpush.msra.mxu0 0.0
    %522 = vmatpush.msra.mxu0 0.0
    %523 = vmatpush.msra.mxu0 0.0
    %524 = vmatpush.msra.mxu0 0.0
    %525 = vmatpush.msra.mxu0 0.0
    %526 = vmatpush.msra.mxu0 0.0
    %527 = vmatpush.msra.mxu0 0.0
    %528 = vmatpush.msra.mxu0 0.0
    %529 = vmatpush.msra.mxu0 0.0
    %530 = vmatpush.msra.mxu0 0.0
    %531 = vmatpush.msra.mxu0 0.0
    %532 = vmatpush.msra.mxu0 0.0
    %533 = vmatpush.msra.mxu0 %v510
    %534 = vmatpush.msra.mxu0 %v508
    %535 = vmatpush.msra.mxu0 %v506
    %536 = vmatpush.msra.mxu0 %v504
    %537 = vmatmul.f32.gmra.mxu0 %v516
    %v538 = vpop.f32.mrf.mxu0
    %v539 = vadd.f32 %v502, %v538
    %540 = vmatmul.f32.gmra.mxu0 %v519
    %v541 = vpop.f32.mrf.mxu0
    %v542 = vadd.f32 %v502, %v541
    %543 = vdwg.mxu0
    %v544 = vadd.f32 %v539, %v60
    %v545 = vadd.f32 %v542, %v61
    %v547 = vsel %vm71, %v544, 0
    %v550 = vsel %vm71, %v545, 0
    %552 = vmatpush.msra.mxu0 0.0
    %553 = vmatpush.msra.mxu0 0.0
    %554 = vmatpush.msra.mxu0 0.0
    %555 = vmatpush.msra.mxu0 0.0
    %556 = vmatpush.msra.mxu0 0.0
    %557 = vmatpush.msra.mxu0 0.0
    %558 = vmatpush.msra.mxu0 0.0
    %559 = vmatpush.msra.mxu0 0.0
    %560 = vmatpush.msra.mxu0 0.0
    %561 = vmatpush.msra.mxu0 0.0
    %562 = vmatpush.msra.mxu0 0.0
    %563 = vmatpush.msra.mxu0 0.0
    %564 = vmatpush.msra.mxu0 0.03125
    %565 = vmatpush.msra.mxu0 0.03125
    %566 = vmatpush.msra.mxu0 0.03125
    %567 = vmatpush.msra.mxu0 0.03125
    %568 = vmatmul.f32.gmra.mxu0 %v547
    %v569 = vpop.f32.mrf.mxu0
    %v570 = vadd.f32 0.0, %v569
    %571 = vmatmul.f32.gmra.mxu0 %v550
    %v572 = vpop.f32.mrf.mxu0
    %v573 = vadd.f32 0.0, %v572
    %574 = vdwg.mxu0
    %v575 = vmul.f32 %v544, %v544
    %v576 = vmul.f32 %v545, %v545
    %v578 = vsel %vm71, %v575, 0
    %v581 = vsel %vm71, %v576, 0
    %583 = vmatpush.msra.mxu0 0.0
    %584 = vmatpush.msra.mxu0 0.0
    %585 = vmatpush.msra.mxu0 0.0
    %586 = vmatpush.msra.mxu0 0.0
    %587 = vmatpush.msra.mxu0 0.0
    %588 = vmatpush.msra.mxu0 0.0
    %589 = vmatpush.msra.mxu0 0.0
    %590 = vmatpush.msra.mxu0 0.0
    %591 = vmatpush.msra.mxu0 0.0
    %592 = vmatpush.msra.mxu0 0.0
    %593 = vmatpush.msra.mxu0 0.0
    %594 = vmatpush.msra.mxu0 0.0
    %595 = vmatpush.msra.mxu0 0.03125
    %596 = vmatpush.msra.mxu0 0.03125
    %597 = vmatpush.msra.mxu0 0.03125
    %598 = vmatpush.msra.mxu0 0.03125
    %599 = vmatmul.f32.gmra.mxu0 %v578
    %v600 = vpop.f32.mrf.mxu0
    %v601 = vadd.f32 0.0, %v600
    %602 = vmatmul.f32.gmra.mxu0 %v581
    %v603 = vpop.f32.mrf.mxu0
    %v604 = vadd.f32 0.0, %v603
    %605 = vdwg.mxu0
    %v606 = vmul.f32 %v570, %v570
    %v607 = vmul.f32 %v573, %v573
    %v608 = vsub.f32 %v601, %v606
    %v609 = vsub.f32 %v604, %v607
    %v610 = vsub.f32 %v544, %v570
    %v611 = vsub.f32 %v545, %v573
    %v612 = vadd.f32 %v608, 1e-05
    %v613 = vadd.f32 %v609, 1e-05
    %v614 = vrsqrt.pop %v612
    %v615 = vmul.f32 %v614, %v612
    %v616 = vmul.f32 %v615, %v614
    %v617 = vmul.f32 0.5, %v616
    %v618 = vsub.f32 1.5, %v617
    %v619 = vmul.f32 %v614, %v618
    %vm620 = vweird.f32 %v612
    %vm621 = vweird.f32 %v614
    %vm622 = vmor %vm620, %vm621
    %v623 = vsel %vm622, %v614, %v619
    %v624 = vrsqrt.pop %v613
    %v625 = vmul.f32 %v624, %v613
    %v626 = vmul.f32 %v625, %v624
    %v627 = vmul.f32 0.5, %v626
    %v628 = vsub.f32 1.5, %v627
    %v629 = vmul.f32 %v624, %v628
    %vm630 = vweird.f32 %v613
    %vm631 = vweird.f32 %v624
    %vm632 = vmor %vm630, %vm631
    %v633 = vsel %vm632, %v624, %v629
    %v634 = vmul.f32 %v610, %v623
    %v635 = vmul.f32 %v611, %v633
    %v636 = vperm.slane %v65, 0
    %v637 = vmul.f32 %v634, %v636
    %v638 = vmul.f32 %v635, %v636
    %v639 = vperm.slane %v66, 0
    %v640 = vadd.f32 %v637, %v639
    %v641 = vadd.f32 %v638, %v639
    %v642 = vperm.slane %v63, 0
    %v644 = vsel %vm71, %v640, 0
    %v647 = vsel %vm71, %v641, 0
    %649 = vmatpush.msra.mxu0 0.0
    %650 = vmatpush.msra.mxu0 0.0
    %651 = vmatpush.msra.mxu0 0.0
    %652 = vmatpush.msra.mxu0 0.0
    %653 = vmatpush.msra.mxu0 0.0
    %654 = vmatpush.msra.mxu0 0.0
    %655 = vmatpush.msra.mxu0 0.0
    %656 = vmatpush.msra.mxu0 0.0
    %657 = vmatpush.msra.mxu0 0.0
    %658 = vmatpush.msra.mxu0 0.0
    %659 = vmatpush.msra.mxu0 0.0
    %660 = vmatpush.msra.mxu0 0.0
    %661 = vmatpush.msra.mxu0 %v51
    %662 = vmatpush.msra.mxu0 %v50
    %663 = vmatpush.msra.mxu0 %v49
    %664 = vmatpush.msra.mxu0 %v48
    %665 = vmatmul.f32.gmra.mxu0 %v644
    %v666 = vpop.f32.mrf.mxu0
    %v667 = vadd.f32 %v642, %v666
    %668 = vmatmul.f32.gmra.mxu0 %v647
    %v669 = vpop.f32.mrf.mxu0
    %v670 = vadd.f32 %v642, %v669
    %671 = vdwg.mxu0
    %v672 = vmax.f32 %v667, 0.0
    %v673 = vmax.f32 %v670, 0.0
    %v674 = vperm.slane %v67, 0
    %v676 = vsel %vm425, %v672, 0
    %v679 = vsel %vm425, %v673, 0
    %681 = vmatpush.msra.mxu0 0.0
    %682 = vmatpush.msra.mxu0 0.0
    %683 = vmatpush.msra.mxu0 0.0
    %684 = vmatpush.msra.mxu0 0.0
    %685 = vmatpush.msra.mxu0 0.0
    %686 = vmatpush.msra.mxu0 0.0
    %687 = vmatpush.msra.mxu0 0.0
    %688 = vmatpush.msra.mxu0 0.0
    %689 = vmatpush.msra.mxu0 %v59
    %690 = vmatpush.msra.mxu0 %v58
    %691 = vmatpush.msra.mxu0 %v57
    %692 = vmatpush.msra.mxu0 %v56
    %693 = vmatpush.msra.mxu0 %v55
    %694 = vmatpush.msra.mxu0 %v54
    %695 = vmatpush.msra.mxu0 %v53
    %696 = vmatpush.msra.mxu0 %v52
    %697 = vmatmul.f32.gmra.mxu0 %v676
    %v698 = vpop.f32.mrf.mxu0
    %v699 = vadd.f32 %v674, %v698
    %700 = vmatmul.f32.gmra.mxu0 %v679
    %v701 = vpop.f32.mrf.mxu0
    %v702 = vadd.f32 %v674, %v701
    %703 = vdwg.mxu0
    %v704 = vadd.f32 %v699, %v640
    %v705 = vadd.f32 %v702, %v641
    %v707 = vsel %vm71, %v704, 0
    %v710 = vsel %vm71, %v705, 0
    %712 = vmatpush.msra.mxu0 0.0
    %713 = vmatpush.msra.mxu0 0.0
    %714 = vmatpush.msra.mxu0 0.0
    %715 = vmatpush.msra.mxu0 0.0
    %716 = vmatpush.msra.mxu0 0.0
    %717 = vmatpush.msra.mxu0 0.0
    %718 = vmatpush.msra.mxu0 0.0
    %719 = vmatpush.msra.mxu0 0.0
    %720 = vmatpush.msra.mxu0 0.0
    %721 = vmatpush.msra.mxu0 0.0
    %722 = vmatpush.msra.mxu0 0.0
    %723 = vmatpush.msra.mxu0 0.0
    %724 = vmatpush.msra.mxu0 0.03125
    %725 = vmatpush.msra.mxu0 0.03125
    %726 = vmatpush.msra.mxu0 0.03125
    %727 = vmatpush.msra.mxu0 0.03125
    %728 = vmatmul.f32.gmra.mxu0 %v707
    %v729 = vpop.f32.mrf.mxu0
    %v730 = vadd.f32 0.0, %v729
    %731 = vmatmul.f32.gmra.mxu0 %v710
    %v732 = vpop.f32.mrf.mxu0
    %v733 = vadd.f32 0.0, %v732
    %734 = vdwg.mxu0
    %v735 = vmul.f32 %v704, %v704
    %v736 = vmul.f32 %v705, %v705
    %v738 = vsel %vm71, %v735, 0
    %v741 = vsel %vm71, %v736, 0
    %743 = vmatpush.msra.mxu0 0.0
    %744 = vmatpush.msra.mxu0 0.0
    %745 = vmatpush.msra.mxu0 0.0
    %746 = vmatpush.msra.mxu0 0.0
    %747 = vmatpush.msra.mxu0 0.0
    %748 = vmatpush.msra.mxu0 0.0
    %749 = vmatpush.msra.mxu0 0.0
    %750 = vmatpush.msra.mxu0 0.0
    %751 = vmatpush.msra.mxu0 0.0
    %752 = vmatpush.msra.mxu0 0.0
    %753 = vmatpush.msra.mxu0 0.0
    %754 = vmatpush.msra.mxu0 0.0
    %755 = vmatpush.msra.mxu0 0.03125
    %756 = vmatpush.msra.mxu0 0.03125
    %757 = vmatpush.msra.mxu0 0.03125
    %758 = vmatpush.msra.mxu0 0.03125
    %759 = vmatmul.f32.gmra.mxu0 %v738
    %v760 = vpop.f32.mrf.mxu0
    %v761 = vadd.f32 0.0, %v760
    %762 = vmatmul.f32.gmra.mxu0 %v741
    %v763 = vpop.f32.mrf.mxu0
    %v764 = vadd.f32 0.0, %v763
    %765 = vdwg.mxu0
    %v766 = vmul.f32 %v730, %v730
    %v767 = vmul.f32 %v733, %v733
    %v768 = vsub.f32 %v761, %v766
    %v769 = vsub.f32 %v764, %v767
    %v770 = vsub.f32 %v704, %v730
    %v771 = vsub.f32 %v705, %v733
    %v772 = vadd.f32 %v768, 1e-05
    %v773 = vadd.f32 %v769, 1e-05
    %v774 = vrsqrt.pop %v772
    %v775 = vmul.f32 %v774, %v772
    %v776 = vmul.f32 %v775, %v774
    %v777 = vmul.f32 0.5, %v776
    %v778 = vsub.f32 1.5, %v777
    %v779 = vmul.f32 %v774, %v778
    %vm780 = vweird.f32 %v772
    %vm781 = vweird.f32 %v774
    %vm782 = vmor %vm780, %vm781
    %v783 = vsel %vm782, %v774, %v779
    %v784 = vrsqrt.pop %v773
    %v785 = vmul.f32 %v784, %v773
    %v786 = vmul.f32 %v785, %v784
    %v787 = vmul.f32 0.5, %v786
    %v788 = vsub.f32 1.5, %v787
    %v789 = vmul.f32 %v784, %v788
    %vm790 = vweird.f32 %v773
    %vm791 = vweird.f32 %v784
    %vm792 = vmor %vm790, %vm791
    %v793 = vsel %vm792, %v784, %v789
    %v794 = vmul.f32 %v770, %v783
    %v795 = vmul.f32 %v771, %v793
    %v796 = vperm.slane %v68, 0
    %v797 = vmul.f32 %v794, %v796
    %v798 = vmul.f32 %v795, %v796
    %v799 = vperm.slane %v69, 0
    %v800 = vadd.f32 %v797, %v799
    %v801 = vadd.f32 %v798, %v799
    %802 = vst.msk [vmem:[#allocation7] sm:$0xff] %vm71, %v800
    %803 = vst.msk [vmem:[#allocation7 + $0x8] sm:$0xff] %vm71, %v801
    // Predicated region
    $region18: #{tpu_custom_call.1} parent=1 // pred_check
      _
    $region19: #{tpu_custom_call.1} parent=1 // pred_check_branch
      %805 = sbr.rel (0) target = $region21
    $region20: #{tpu_custom_call.1} parent=1 // pred_region
      %807 = vsyncadd [#allocation4], 0
      %s808 = sshll.u32 [#allocation7], 4
      %s809 = int_to_ptr.vmem [resolvable:$true] %s808
      %s810 = sshll.u32 %s2, 4
      %s811 = int_to_ptr.hbm [resolvable:$true] %s810
      %816 = dma.vmem_to_hbm [thread:$0]  %s809, 256, %s811, [#allocation4], 128, 128, 8
    $region21: #{tpu_custom_call.1} parent=1 // pred_fallthru
      _
    // Predicated region
    $region22: #{tpu_custom_call.1} parent=1 // pred_check
      _
    $region23: #{tpu_custom_call.1} parent=1 // pred_check_branch
      %818 = sbr.rel (0) target = $region25
    $region24: #{tpu_custom_call.1} parent=1 // pred_region
      %820 = dma.done [#allocation4], 256
    $region25: #{tpu_custom_call.1} parent=1 // pred_fallthru
      _
    %821 = vsyncpa [#allocation3], 1
    %822 = vsyncpa [#allocation6], 1
    %823 = vsyncpa [#allocation4], 1

</llo_original>
